<compile_context>
chip_gen: v6e
topology: v6e:2x2x1
jax: 0.10.0
libtpu: 0.0.40
codegen_flags: <defaults>
</compile_context>

<pallas_src>
import functools

import jax
import jax.numpy as jnp
from jax.experimental import pallas as pl
from jax.experimental.pallas import tpu as pltpu


def _gather_rows(idx_sm, emb_hbm, rowbuf, sems, tm):
    """Gather `tm` embedding rows (one per token of this tile) HBM -> VMEM."""
    t = pl.program_id(0)
    base = t * tm
    # Issue all row DMAs first (they run concurrently), then wait on all.
    for r in range(tm):
        tok = idx_sm[base + r]                       # SMEM scalar read
        pltpu.make_async_copy(
            emb_hbm.at[pl.ds(tok, 1)],               # (1, Vpad) HBM slice
            rowbuf.at[pl.ds(r, 1)],                  # (1, Vpad) VMEM slot
            sems.at[r],
        ).start()
    for r in range(tm):
        pltpu.make_async_copy(
            emb_hbm.at[pl.ds(0, 1)],                 # src only needed for shape
            rowbuf.at[pl.ds(r, 1)],
            sems.at[r],
        ).wait()


def _bigram_logits_kernel(idx_sm, emb_hbm, logits_ref, rowbuf, sems, *, tm):
    """Inference path: logits only (no cross-entropy work)."""
    _gather_rows(idx_sm, emb_hbm, rowbuf, sems, tm)
    logits_ref[...] = rowbuf[...]


def _bigram_loss_kernel(idx_sm, tgt_ref, emb_hbm, logits_ref, loss_ref,
                        rowbuf, sems, *, tm, vocab):
    """Training path: logits + per-row cross-entropy."""
    _gather_rows(idx_sm, emb_hbm, rowbuf, sems, tm)
    logits = rowbuf[...]                              # (tm, Vpad) f32
    logits_ref[...] = logits

    vpad = logits.shape[-1]
    col = jax.lax.broadcasted_iota(jnp.int32, (tm, vpad), 1)
    valid = col < vocab                               # mask padded lanes

    # logsumexp over the real vocab columns only.
    lm = jnp.where(valid, logits, jnp.float32(-1e30))
    m = jnp.max(lm, axis=-1, keepdims=True)
    lse = jnp.log(jnp.sum(jnp.exp(lm - m), axis=-1, keepdims=True)) + m

    # Target logit via a single fused select (no float one-hot cast+mul).
    tgt = tgt_ref[...]                                # (tm, 1) int32
    tgt_logit = jnp.sum(jnp.where(col == tgt, logits, 0.0),
                        axis=-1, keepdims=True)

    loss_ref[...] = lse - tgt_logit                   # per-row CE


def bigram_forward(idx, emb_table, targets=None, *, tm=8):
    """Mirrors BigramModel.forward:
       - targets is None -> (logits of shape (B, T, V), None)
       - targets given   -> (logits of shape (B*T, V), scalar mean CE loss)"""
    B, T = idx.shape
    V = emb_table.shape[0]
    BT = B * T

    vpad = max(128, ((V + 127) // 128) * 128)         # lane-dense last dim
    bt_pad = ((BT + tm - 1) // tm) * tm               # sublane-aligned tiles
    n_tiles = bt_pad // tm

    # Clamp ids so the gather DMA can never go out of bounds.
    idx_flat = jnp.clip(idx.reshape(-1).astype(jnp.int32), 0, V - 1)
    idx_flat = jnp.pad(idx_flat, (0, bt_pad - BT))

    # Pad vocab columns up to a multiple of 128 lanes (zeros; masked in-kernel).
    emb_pad = jnp.pad(emb_table.astype(jnp.float32), ((0, 0), (0, vpad - V)))

    compiler_params = pltpu.CompilerParams(dimension_semantics=("parallel",))
    scratch = [
        pltpu.VMEM((tm, vpad), jnp.float32),          # gathered rows
        pltpu.SemaphoreType.DMA((tm,)),               # one sem per row DMA
    ]

    if targets is None:
        kernel = functools.partial(_bigram_logits_kernel, tm=tm)
        logits_pad = pl.pallas_call(
            kernel,
            out_shape=jax.ShapeDtypeStruct((bt_pad, vpad), jnp.float32),
            grid_spec=pltpu.PrefetchScalarGridSpec(
                num_scalar_prefetch=1,
                grid=(n_tiles,),
                in_specs=[
                    pl.BlockSpec(memory_space=pl.ANY),          # table in HBM
                ],
                out_specs=pl.BlockSpec((tm, vpad), lambda t, idx_sm: (t, 0)),
                scratch_shapes=scratch,
            ),
            compiler_params=compiler_params,
        )(idx_flat, emb_pad)
        logits = logits_pad[:BT, :V].reshape(B, T, V)
        return logits, None

    tgt_flat = targets.reshape(-1).astype(jnp.int32)
    tgt_flat = jnp.pad(tgt_flat, (0, bt_pad - BT)).reshape(bt_pad, 1)

    kernel = functools.partial(_bigram_loss_kernel, tm=tm, vocab=V)
    logits_pad, per_row = pl.pallas_call(
        kernel,
        out_shape=(
            jax.ShapeDtypeStruct((bt_pad, vpad), jnp.float32),
            jax.ShapeDtypeStruct((bt_pad, 1), jnp.float32),
        ),
        grid_spec=pltpu.PrefetchScalarGridSpec(
            num_scalar_prefetch=1,
            grid=(n_tiles,),
            in_specs=[
                pl.BlockSpec((tm, 1), lambda t, idx_sm: (t, 0)),  # targets
                pl.BlockSpec(memory_space=pl.ANY),                # table in HBM
            ],
            out_specs=(
                pl.BlockSpec((tm, vpad), lambda t, idx_sm: (t, 0)),
                pl.BlockSpec((tm, 1), lambda t, idx_sm: (t, 0)),
            ),
            scratch_shapes=scratch,
        ),
        compiler_params=compiler_params,
    )(idx_flat, tgt_flat, emb_pad)

    logits = logits_pad[:BT, :V]
    loss = jnp.mean(per_row[:BT, 0])                  # partials reduced here
    return logits, loss


if __name__ == "__main__":
    key = jax.random.PRNGKey(0)
    k_emb, k_idx, k_tgt = jax.random.split(key, 3)

    vocab_size = 32
    B, T = 2, 8

    # nn.Embedding default init: N(0, 1)
    emb_table = jax.random.normal(k_emb, (vocab_size, vocab_size), dtype=jnp.float32)
    idx = jax.random.randint(k_idx, (B, T), 0, vocab_size, dtype=jnp.int32)
    targets = jax.random.randint(k_tgt, (B, T), 0, vocab_size, dtype=jnp.int32)

    # With targets: logits (B*T, V) + scalar loss.
    logits, loss = bigram_forward(idx, emb_table, targets)
    jax.block_until_ready((logits, loss))

    # Without targets: logits (B, T, V), loss None.
    logits_no_t, loss_no_t = bigram_forward(idx, emb_table, None)
    jax.block_until_ready(logits_no_t)

    # Pure-JAX reference check.
    ref_logits = emb_table[idx.reshape(-1)]                       # (B*T, V)
    ref_lse = jax.nn.logsumexp(ref_logits, axis=-1)
    ref_loss = jnp.mean(ref_lse - ref_logits[jnp.arange(B * T), targets.reshape(-1)])

    assert logits.shape == (B * T, vocab_size), "logits shape mismatch"
    assert jnp.allclose(logits, ref_logits, atol=1e-5), "logits mismatch"
    assert jnp.allclose(loss, ref_loss, atol=1e-5), "loss mismatch"
    assert logits_no_t.shape == (B, T, vocab_size) and loss_no_t is None
    assert jnp.allclose(logits_no_t.reshape(B * T, vocab_size), ref_logits,
                        atol=1e-5), "inference logits mismatch"

    print("KERNEL_OK")
</pallas_src>

<mosaic_0001>
module attributes {stable_mosaic.version = 11 : i64} {
  func.func @_bigram_loss_kernel(%arg0: i32, %arg1: memref<16xi32, #tpu.memory_space<smem>>, %arg2: memref<8x1xi32, #tpu.memory_space<vmem>>, %arg3: memref<32x128xf32, #tpu.memory_space<any>>, %arg4: memref<8x128xf32, #tpu.memory_space<vmem>>, %arg5: memref<8x1xf32, #tpu.memory_space<vmem>>, %arg6: memref<8x128xf32, #tpu.memory_space<vmem>>, %arg7: memref<8x!tpu.dma_semaphore, #tpu.memory_space<semaphore_mem>>) attributes {dimension_semantics = [#tpu.dimension_semantics<parallel>], iteration_bounds = array<i64: 2>, scalar_prefetch = 1 : i64, scratch_operands = 2 : i64, tpu.core_type = #tpu.core_type<tc>, window_params = [{transform_indices = @transform_0, window_bounds = array<i64: 8, 1>}, {}, {transform_indices = @transform_2, window_bounds = array<i64: 8, 128>}, {transform_indices = @transform_3, window_bounds = array<i64: 8, 1>}]} {
    %c8_i32 = arith.constant 8 : i32
    %0 = arith.muli %arg0, %c8_i32 : i32
    %c0_i32 = arith.constant 0 : i32
    %1 = arith.addi %0, %c0_i32 : i32
    %2 = arith.index_cast %1 : i32 to index
    %3 = memref.load %arg1[%2] : memref<16xi32, #tpu.memory_space<smem>>
    %c0_i32_0 = arith.constant 0 : i32
    %c0_i32_1 = arith.constant 0 : i32
    %4 = tpu.memref_slice %arg3[%3, %c0_i32_1] : memref<32x128xf32, #tpu.memory_space<any>> -> memref<1x128xf32, #tpu.memory_space<any>>
    %c0_i32_2 = arith.constant 0 : i32
    %c0_i32_3 = arith.constant 0 : i32
    %5 = tpu.memref_slice %arg6[%c0_i32_2, %c0_i32_3] : memref<8x128xf32, #tpu.memory_space<vmem>> -> memref<1x128xf32, #tpu.memory_space<vmem>>
    %6 = tpu.memref_slice %arg7[%c0_i32_0] : memref<8x!tpu.dma_semaphore, #tpu.memory_space<semaphore_mem>> -> memref<1x!tpu.dma_semaphore, #tpu.memory_space<semaphore_mem>>
    %7 = tpu.memref_squeeze %6 : memref<1x!tpu.dma_semaphore, #tpu.memory_space<semaphore_mem>> -> memref<!tpu.dma_semaphore, #tpu.memory_space<semaphore_mem>>
    tpu.enqueue_dma source(%4 : memref<1x128xf32, #tpu.memory_space<any>>) target(%5 : memref<1x128xf32, #tpu.memory_space<vmem>>) target_semaphore(%7 : memref<!tpu.dma_semaphore, #tpu.memory_space<semaphore_mem>>)
    %c1_i32 = arith.constant 1 : i32
    %8 = arith.addi %0, %c1_i32 : i32
    %9 = arith.index_cast %8 : i32 to index
    %10 = memref.load %arg1[%9] : memref<16xi32, #tpu.memory_space<smem>>
    %c1_i32_4 = arith.constant 1 : i32
    %c0_i32_5 = arith.constant 0 : i32
    %11 = tpu.memref_slice %arg3[%10, %c0_i32_5] : memref<32x128xf32, #tpu.memory_space<any>> -> memref<1x128xf32, #tpu.memory_space<any>>
    %c1_i32_6 = arith.constant 1 : i32
    %c0_i32_7 = arith.constant 0 : i32
    %12 = tpu.memref_slice %arg6[%c1_i32_6, %c0_i32_7] : memref<8x128xf32, #tpu.memory_space<vmem>> -> memref<1x128xf32, #tpu.memory_space<vmem>>
    %13 = tpu.memref_slice %arg7[%c1_i32_4] : memref<8x!tpu.dma_semaphore, #tpu.memory_space<semaphore_mem>> -> memref<1x!tpu.dma_semaphore, #tpu.memory_space<semaphore_mem>>
    %14 = tpu.memref_squeeze %13 : memref<1x!tpu.dma_semaphore, #tpu.memory_space<semaphore_mem>> -> memref<!tpu.dma_semaphore, #tpu.memory_space<semaphore_mem>>
    tpu.enqueue_dma source(%11 : memref<1x128xf32, #tpu.memory_space<any>>) target(%12 : memref<1x128xf32, #tpu.memory_space<vmem>>) target_semaphore(%14 : memref<!tpu.dma_semaphore, #tpu.memory_space<semaphore_mem>>)
    %c2_i32 = arith.constant 2 : i32
    %15 = arith.addi %0, %c2_i32 : i32
    %16 = arith.index_cast %15 : i32 to index
    %17 = memref.load %arg1[%16] : memref<16xi32, #tpu.memory_space<smem>>
    %c2_i32_8 = arith.constant 2 : i32
    %c0_i32_9 = arith.constant 0 : i32
    %18 = tpu.memref_slice %arg3[%17, %c0_i32_9] : memref<32x128xf32, #tpu.memory_space<any>> -> memref<1x128xf32, #tpu.memory_space<any>>
    %c2_i32_10 = arith.constant 2 : i32
    %c0_i32_11 = arith.constant 0 : i32
    %19 = tpu.memref_slice %arg6[%c2_i32_10, %c0_i32_11] : memref<8x128xf32, #tpu.memory_space<vmem>> -> memref<1x128xf32, #tpu.memory_space<vmem>>
    %20 = tpu.memref_slice %arg7[%c2_i32_8] : memref<8x!tpu.dma_semaphore, #tpu.memory_space<semaphore_mem>> -> memref<1x!tpu.dma_semaphore, #tpu.memory_space<semaphore_mem>>
    %21 = tpu.memref_squeeze %20 : memref<1x!tpu.dma_semaphore, #tpu.memory_space<semaphore_mem>> -> memref<!tpu.dma_semaphore, #tpu.memory_space<semaphore_mem>>
    tpu.enqueue_dma source(%18 : memref<1x128xf32, #tpu.memory_space<any>>) target(%19 : memref<1x128xf32, #tpu.memory_space<vmem>>) target_semaphore(%21 : memref<!tpu.dma_semaphore, #tpu.memory_space<semaphore_mem>>)
    %c3_i32 = arith.constant 3 : i32
    %22 = arith.addi %0, %c3_i32 : i32
    %23 = arith.index_cast %22 : i32 to index
    %24 = memref.load %arg1[%23] : memref<16xi32, #tpu.memory_space<smem>>
    %c3_i32_12 = arith.constant 3 : i32
    %c0_i32_13 = arith.constant 0 : i32
    %25 = tpu.memref_slice %arg3[%24, %c0_i32_13] : memref<32x128xf32, #tpu.memory_space<any>> -> memref<1x128xf32, #tpu.memory_space<any>>
    %c3_i32_14 = arith.constant 3 : i32
    %c0_i32_15 = arith.constant 0 : i32
    %26 = tpu.memref_slice %arg6[%c3_i32_14, %c0_i32_15] : memref<8x128xf32, #tpu.memory_space<vmem>> -> memref<1x128xf32, #tpu.memory_space<vmem>>
    %27 = tpu.memref_slice %arg7[%c3_i32_12] : memref<8x!tpu.dma_semaphore, #tpu.memory_space<semaphore_mem>> -> memref<1x!tpu.dma_semaphore, #tpu.memory_space<semaphore_mem>>
    %28 = tpu.memref_squeeze %27 : memref<1x!tpu.dma_semaphore, #tpu.memory_space<semaphore_mem>> -> memref<!tpu.dma_semaphore, #tpu.memory_space<semaphore_mem>>
    tpu.enqueue_dma source(%25 : memref<1x128xf32, #tpu.memory_space<any>>) target(%26 : memref<1x128xf32, #tpu.memory_space<vmem>>) target_semaphore(%28 : memref<!tpu.dma_semaphore, #tpu.memory_space<semaphore_mem>>)
    %c4_i32 = arith.constant 4 : i32
    %29 = arith.addi %0, %c4_i32 : i32
    %30 = arith.index_cast %29 : i32 to index
    %31 = memref.load %arg1[%30] : memref<16xi32, #tpu.memory_space<smem>>
    %c4_i32_16 = arith.constant 4 : i32
    %c0_i32_17 = arith.constant 0 : i32
    %32 = tpu.memref_slice %arg3[%31, %c0_i32_17] : memref<32x128xf32, #tpu.memory_space<any>> -> memref<1x128xf32, #tpu.memory_space<any>>
    %c4_i32_18 = arith.constant 4 : i32
    %c0_i32_19 = arith.constant 0 : i32
    %33 = tpu.memref_slice %arg6[%c4_i32_18, %c0_i32_19] : memref<8x128xf32, #tpu.memory_space<vmem>> -> memref<1x128xf32, #tpu.memory_space<vmem>>
    %34 = tpu.memref_slice %arg7[%c4_i32_16] : memref<8x!tpu.dma_semaphore, #tpu.memory_space<semaphore_mem>> -> memref<1x!tpu.dma_semaphore, #tpu.memory_space<semaphore_mem>>
    %35 = tpu.memref_squeeze %34 : memref<1x!tpu.dma_semaphore, #tpu.memory_space<semaphore_mem>> -> memref<!tpu.dma_semaphore, #tpu.memory_space<semaphore_mem>>
    tpu.enqueue_dma source(%32 : memref<1x128xf32, #tpu.memory_space<any>>) target(%33 : memref<1x128xf32, #tpu.memory_space<vmem>>) target_semaphore(%35 : memref<!tpu.dma_semaphore, #tpu.memory_space<semaphore_mem>>)
    %c5_i32 = arith.constant 5 : i32
    %36 = arith.addi %0, %c5_i32 : i32
    %37 = arith.index_cast %36 : i32 to index
    %38 = memref.load %arg1[%37] : memref<16xi32, #tpu.memory_space<smem>>
    %c5_i32_20 = arith.constant 5 : i32
    %c0_i32_21 = arith.constant 0 : i32
    %39 = tpu.memref_slice %arg3[%38, %c0_i32_21] : memref<32x128xf32, #tpu.memory_space<any>> -> memref<1x128xf32, #tpu.memory_space<any>>
    %c5_i32_22 = arith.constant 5 : i32
    %c0_i32_23 = arith.constant 0 : i32
    %40 = tpu.memref_slice %arg6[%c5_i32_22, %c0_i32_23] : memref<8x128xf32, #tpu.memory_space<vmem>> -> memref<1x128xf32, #tpu.memory_space<vmem>>
    %41 = tpu.memref_slice %arg7[%c5_i32_20] : memref<8x!tpu.dma_semaphore, #tpu.memory_space<semaphore_mem>> -> memref<1x!tpu.dma_semaphore, #tpu.memory_space<semaphore_mem>>
    %42 = tpu.memref_squeeze %41 : memref<1x!tpu.dma_semaphore, #tpu.memory_space<semaphore_mem>> -> memref<!tpu.dma_semaphore, #tpu.memory_space<semaphore_mem>>
    tpu.enqueue_dma source(%39 : memref<1x128xf32, #tpu.memory_space<any>>) target(%40 : memref<1x128xf32, #tpu.memory_space<vmem>>) target_semaphore(%42 : memref<!tpu.dma_semaphore, #tpu.memory_space<semaphore_mem>>)
    %c6_i32 = arith.constant 6 : i32
    %43 = arith.addi %0, %c6_i32 : i32
    %44 = arith.index_cast %43 : i32 to index
    %45 = memref.load %arg1[%44] : memref<16xi32, #tpu.memory_space<smem>>
    %c6_i32_24 = arith.constant 6 : i32
    %c0_i32_25 = arith.constant 0 : i32
    %46 = tpu.memref_slice %arg3[%45, %c0_i32_25] : memref<32x128xf32, #tpu.memory_space<any>> -> memref<1x128xf32, #tpu.memory_space<any>>
    %c6_i32_26 = arith.constant 6 : i32
    %c0_i32_27 = arith.constant 0 : i32
    %47 = tpu.memref_slice %arg6[%c6_i32_26, %c0_i32_27] : memref<8x128xf32, #tpu.memory_space<vmem>> -> memref<1x128xf32, #tpu.memory_space<vmem>>
    %48 = tpu.memref_slice %arg7[%c6_i32_24] : memref<8x!tpu.dma_semaphore, #tpu.memory_space<semaphore_mem>> -> memref<1x!tpu.dma_semaphore, #tpu.memory_space<semaphore_mem>>
    %49 = tpu.memref_squeeze %48 : memref<1x!tpu.dma_semaphore, #tpu.memory_space<semaphore_mem>> -> memref<!tpu.dma_semaphore, #tpu.memory_space<semaphore_mem>>
    tpu.enqueue_dma source(%46 : memref<1x128xf32, #tpu.memory_space<any>>) target(%47 : memref<1x128xf32, #tpu.memory_space<vmem>>) target_semaphore(%49 : memref<!tpu.dma_semaphore, #tpu.memory_space<semaphore_mem>>)
    %c7_i32 = arith.constant 7 : i32
    %50 = arith.addi %0, %c7_i32 : i32
    %51 = arith.index_cast %50 : i32 to index
    %52 = memref.load %arg1[%51] : memref<16xi32, #tpu.memory_space<smem>>
    %c7_i32_28 = arith.constant 7 : i32
    %c0_i32_29 = arith.constant 0 : i32
    %53 = tpu.memref_slice %arg3[%52, %c0_i32_29] : memref<32x128xf32, #tpu.memory_space<any>> -> memref<1x128xf32, #tpu.memory_space<any>>
    %c7_i32_30 = arith.constant 7 : i32
    %c0_i32_31 = arith.constant 0 : i32
    %54 = tpu.memref_slice %arg6[%c7_i32_30, %c0_i32_31] : memref<8x128xf32, #tpu.memory_space<vmem>> -> memref<1x128xf32, #tpu.memory_space<vmem>>
    %55 = tpu.memref_slice %arg7[%c7_i32_28] : memref<8x!tpu.dma_semaphore, #tpu.memory_space<semaphore_mem>> -> memref<1x!tpu.dma_semaphore, #tpu.memory_space<semaphore_mem>>
    %56 = tpu.memref_squeeze %55 : memref<1x!tpu.dma_semaphore, #tpu.memory_space<semaphore_mem>> -> memref<!tpu.dma_semaphore, #tpu.memory_space<semaphore_mem>>
    tpu.enqueue_dma source(%53 : memref<1x128xf32, #tpu.memory_space<any>>) target(%54 : memref<1x128xf32, #tpu.memory_space<vmem>>) target_semaphore(%56 : memref<!tpu.dma_semaphore, #tpu.memory_space<semaphore_mem>>)
    %c0_i32_32 = arith.constant 0 : i32
    %c0_i32_33 = arith.constant 0 : i32
    %c0_i32_34 = arith.constant 0 : i32
    %57 = tpu.memref_slice %arg3[%c0_i32_33, %c0_i32_34] : memref<32x128xf32, #tpu.memory_space<any>> -> memref<1x128xf32, #tpu.memory_space<any>>
    %c0_i32_35 = arith.constant 0 : i32
    %c0_i32_36 = arith.constant 0 : i32
    %58 = tpu.memref_slice %arg6[%c0_i32_35, %c0_i32_36] : memref<8x128xf32, #tpu.memory_space<vmem>> -> memref<1x128xf32, #tpu.memory_space<vmem>>
    %59 = tpu.memref_slice %arg7[%c0_i32_32] : memref<8x!tpu.dma_semaphore, #tpu.memory_space<semaphore_mem>> -> memref<1x!tpu.dma_semaphore, #tpu.memory_space<semaphore_mem>>
    %60 = tpu.memref_squeeze %59 : memref<1x!tpu.dma_semaphore, #tpu.memory_space<semaphore_mem>> -> memref<!tpu.dma_semaphore, #tpu.memory_space<semaphore_mem>>
    tpu.wait_dma2 semaphore(%60 : memref<!tpu.dma_semaphore, #tpu.memory_space<semaphore_mem>>) src(%57 : memref<1x128xf32, #tpu.memory_space<any>>) dst(%58 : memref<1x128xf32, #tpu.memory_space<vmem>>)
    %c1_i32_37 = arith.constant 1 : i32
    %c0_i32_38 = arith.constant 0 : i32
    %c0_i32_39 = arith.constant 0 : i32
    %61 = tpu.memref_slice %arg3[%c0_i32_38, %c0_i32_39] : memref<32x128xf32, #tpu.memory_space<any>> -> memref<1x128xf32, #tpu.memory_space<any>>
    %c1_i32_40 = arith.constant 1 : i32
    %c0_i32_41 = arith.constant 0 : i32
    %62 = tpu.memref_slice %arg6[%c1_i32_40, %c0_i32_41] : memref<8x128xf32, #tpu.memory_space<vmem>> -> memref<1x128xf32, #tpu.memory_space<vmem>>
    %63 = tpu.memref_slice %arg7[%c1_i32_37] : memref<8x!tpu.dma_semaphore, #tpu.memory_space<semaphore_mem>> -> memref<1x!tpu.dma_semaphore, #tpu.memory_space<semaphore_mem>>
    %64 = tpu.memref_squeeze %63 : memref<1x!tpu.dma_semaphore, #tpu.memory_space<semaphore_mem>> -> memref<!tpu.dma_semaphore, #tpu.memory_space<semaphore_mem>>
    tpu.wait_dma2 semaphore(%64 : memref<!tpu.dma_semaphore, #tpu.memory_space<semaphore_mem>>) src(%61 : memref<1x128xf32, #tpu.memory_space<any>>) dst(%62 : memref<1x128xf32, #tpu.memory_space<vmem>>)
    %c2_i32_42 = arith.constant 2 : i32
    %c0_i32_43 = arith.constant 0 : i32
    %c0_i32_44 = arith.constant 0 : i32
    %65 = tpu.memref_slice %arg3[%c0_i32_43, %c0_i32_44] : memref<32x128xf32, #tpu.memory_space<any>> -> memref<1x128xf32, #tpu.memory_space<any>>
    %c2_i32_45 = arith.constant 2 : i32
    %c0_i32_46 = arith.constant 0 : i32
    %66 = tpu.memref_slice %arg6[%c2_i32_45, %c0_i32_46] : memref<8x128xf32, #tpu.memory_space<vmem>> -> memref<1x128xf32, #tpu.memory_space<vmem>>
    %67 = tpu.memref_slice %arg7[%c2_i32_42] : memref<8x!tpu.dma_semaphore, #tpu.memory_space<semaphore_mem>> -> memref<1x!tpu.dma_semaphore, #tpu.memory_space<semaphore_mem>>
    %68 = tpu.memref_squeeze %67 : memref<1x!tpu.dma_semaphore, #tpu.memory_space<semaphore_mem>> -> memref<!tpu.dma_semaphore, #tpu.memory_space<semaphore_mem>>
    tpu.wait_dma2 semaphore(%68 : memref<!tpu.dma_semaphore, #tpu.memory_space<semaphore_mem>>) src(%65 : memref<1x128xf32, #tpu.memory_space<any>>) dst(%66 : memref<1x128xf32, #tpu.memory_space<vmem>>)
    %c3_i32_47 = arith.constant 3 : i32
    %c0_i32_48 = arith.constant 0 : i32
    %c0_i32_49 = arith.constant 0 : i32
    %69 = tpu.memref_slice %arg3[%c0_i32_48, %c0_i32_49] : memref<32x128xf32, #tpu.memory_space<any>> -> memref<1x128xf32, #tpu.memory_space<any>>
    %c3_i32_50 = arith.constant 3 : i32
    %c0_i32_51 = arith.constant 0 : i32
    %70 = tpu.memref_slice %arg6[%c3_i32_50, %c0_i32_51] : memref<8x128xf32, #tpu.memory_space<vmem>> -> memref<1x128xf32, #tpu.memory_space<vmem>>
    %71 = tpu.memref_slice %arg7[%c3_i32_47] : memref<8x!tpu.dma_semaphore, #tpu.memory_space<semaphore_mem>> -> memref<1x!tpu.dma_semaphore, #tpu.memory_space<semaphore_mem>>
    %72 = tpu.memref_squeeze %71 : memref<1x!tpu.dma_semaphore, #tpu.memory_space<semaphore_mem>> -> memref<!tpu.dma_semaphore, #tpu.memory_space<semaphore_mem>>
    tpu.wait_dma2 semaphore(%72 : memref<!tpu.dma_semaphore, #tpu.memory_space<semaphore_mem>>) src(%69 : memref<1x128xf32, #tpu.memory_space<any>>) dst(%70 : memref<1x128xf32, #tpu.memory_space<vmem>>)
    %c4_i32_52 = arith.constant 4 : i32
    %c0_i32_53 = arith.constant 0 : i32
    %c0_i32_54 = arith.constant 0 : i32
    %73 = tpu.memref_slice %arg3[%c0_i32_53, %c0_i32_54] : memref<32x128xf32, #tpu.memory_space<any>> -> memref<1x128xf32, #tpu.memory_space<any>>
    %c4_i32_55 = arith.constant 4 : i32
    %c0_i32_56 = arith.constant 0 : i32
    %74 = tpu.memref_slice %arg6[%c4_i32_55, %c0_i32_56] : memref<8x128xf32, #tpu.memory_space<vmem>> -> memref<1x128xf32, #tpu.memory_space<vmem>>
    %75 = tpu.memref_slice %arg7[%c4_i32_52] : memref<8x!tpu.dma_semaphore, #tpu.memory_space<semaphore_mem>> -> memref<1x!tpu.dma_semaphore, #tpu.memory_space<semaphore_mem>>
    %76 = tpu.memref_squeeze %75 : memref<1x!tpu.dma_semaphore, #tpu.memory_space<semaphore_mem>> -> memref<!tpu.dma_semaphore, #tpu.memory_space<semaphore_mem>>
    tpu.wait_dma2 semaphore(%76 : memref<!tpu.dma_semaphore, #tpu.memory_space<semaphore_mem>>) src(%73 : memref<1x128xf32, #tpu.memory_space<any>>) dst(%74 : memref<1x128xf32, #tpu.memory_space<vmem>>)
    %c5_i32_57 = arith.constant 5 : i32
    %c0_i32_58 = arith.constant 0 : i32
    %c0_i32_59 = arith.constant 0 : i32
    %77 = tpu.memref_slice %arg3[%c0_i32_58, %c0_i32_59] : memref<32x128xf32, #tpu.memory_space<any>> -> memref<1x128xf32, #tpu.memory_space<any>>
    %c5_i32_60 = arith.constant 5 : i32
    %c0_i32_61 = arith.constant 0 : i32
    %78 = tpu.memref_slice %arg6[%c5_i32_60, %c0_i32_61] : memref<8x128xf32, #tpu.memory_space<vmem>> -> memref<1x128xf32, #tpu.memory_space<vmem>>
    %79 = tpu.memref_slice %arg7[%c5_i32_57] : memref<8x!tpu.dma_semaphore, #tpu.memory_space<semaphore_mem>> -> memref<1x!tpu.dma_semaphore, #tpu.memory_space<semaphore_mem>>
    %80 = tpu.memref_squeeze %79 : memref<1x!tpu.dma_semaphore, #tpu.memory_space<semaphore_mem>> -> memref<!tpu.dma_semaphore, #tpu.memory_space<semaphore_mem>>
    tpu.wait_dma2 semaphore(%80 : memref<!tpu.dma_semaphore, #tpu.memory_space<semaphore_mem>>) src(%77 : memref<1x128xf32, #tpu.memory_space<any>>) dst(%78 : memref<1x128xf32, #tpu.memory_space<vmem>>)
    %c6_i32_62 = arith.constant 6 : i32
    %c0_i32_63 = arith.constant 0 : i32
    %c0_i32_64 = arith.constant 0 : i32
    %81 = tpu.memref_slice %arg3[%c0_i32_63, %c0_i32_64] : memref<32x128xf32, #tpu.memory_space<any>> -> memref<1x128xf32, #tpu.memory_space<any>>
    %c6_i32_65 = arith.constant 6 : i32
    %c0_i32_66 = arith.constant 0 : i32
    %82 = tpu.memref_slice %arg6[%c6_i32_65, %c0_i32_66] : memref<8x128xf32, #tpu.memory_space<vmem>> -> memref<1x128xf32, #tpu.memory_space<vmem>>
    %83 = tpu.memref_slice %arg7[%c6_i32_62] : memref<8x!tpu.dma_semaphore, #tpu.memory_space<semaphore_mem>> -> memref<1x!tpu.dma_semaphore, #tpu.memory_space<semaphore_mem>>
    %84 = tpu.memref_squeeze %83 : memref<1x!tpu.dma_semaphore, #tpu.memory_space<semaphore_mem>> -> memref<!tpu.dma_semaphore, #tpu.memory_space<semaphore_mem>>
    tpu.wait_dma2 semaphore(%84 : memref<!tpu.dma_semaphore, #tpu.memory_space<semaphore_mem>>) src(%81 : memref<1x128xf32, #tpu.memory_space<any>>) dst(%82 : memref<1x128xf32, #tpu.memory_space<vmem>>)
    %c7_i32_67 = arith.constant 7 : i32
    %c0_i32_68 = arith.constant 0 : i32
    %c0_i32_69 = arith.constant 0 : i32
    %85 = tpu.memref_slice %arg3[%c0_i32_68, %c0_i32_69] : memref<32x128xf32, #tpu.memory_space<any>> -> memref<1x128xf32, #tpu.memory_space<any>>
    %c7_i32_70 = arith.constant 7 : i32
    %c0_i32_71 = arith.constant 0 : i32
    %86 = tpu.memref_slice %arg6[%c7_i32_70, %c0_i32_71] : memref<8x128xf32, #tpu.memory_space<vmem>> -> memref<1x128xf32, #tpu.memory_space<vmem>>
    %87 = tpu.memref_slice %arg7[%c7_i32_67] : memref<8x!tpu.dma_semaphore, #tpu.memory_space<semaphore_mem>> -> memref<1x!tpu.dma_semaphore, #tpu.memory_space<semaphore_mem>>
    %88 = tpu.memref_squeeze %87 : memref<1x!tpu.dma_semaphore, #tpu.memory_space<semaphore_mem>> -> memref<!tpu.dma_semaphore, #tpu.memory_space<semaphore_mem>>
    tpu.wait_dma2 semaphore(%88 : memref<!tpu.dma_semaphore, #tpu.memory_space<semaphore_mem>>) src(%85 : memref<1x128xf32, #tpu.memory_space<any>>) dst(%86 : memref<1x128xf32, #tpu.memory_space<vmem>>)
    %c0 = arith.constant 0 : index
    %c0_72 = arith.constant 0 : index
    %89 = vector.load %arg6[%c0, %c0_72] : memref<8x128xf32, #tpu.memory_space<vmem>>, vector<8x128xf32>
    %c0_73 = arith.constant 0 : index
    %c0_74 = arith.constant 0 : index
    %90 = vector.load %arg4[%c0_73, %c0_74] : memref<8x128xf32, #tpu.memory_space<vmem>>, vector<8x128xf32>
    tpu.vector_store %arg4[%c0_73, %c0_74], %89 {strides = array<i32>} : memref<8x128xf32, #tpu.memory_space<vmem>>, vector<8x128xf32>,
    %91 = tpu.iota {dimensions = array<i32: 1>} : vector<8x128xi32>
    %c32_i32 = arith.constant 32 : i32
    %92 = vector.broadcast %c32_i32 : i32 to vector<8x128xi32>
    %93 = arith.cmpi slt, %91, %92 : vector<8x128xi32>
    %cst = arith.constant -1.000000e+30 : f32
    %94 = vector.broadcast %cst : f32 to vector<8x128xf32>
    %95 = arith.select %93, %89, %94 : vector<8x128xi1>, vector<8x128xf32>
    %cst_75 = arith.constant dense<0xFF800000> : vector<8xf32>
    %96 = vector.multi_reduction <maximumf>, %95, %cst_75 [1] : vector<8x128xf32> to vector<8xf32>
    %97 = vector.shape_cast %96 : vector<8xf32> to vector<8x1xf32>
    %98 = vector.broadcast %97 : vector<8x1xf32> to vector<8x128xf32>
    %99 = arith.subf %95, %98 : vector<8x128xf32>
    %100 = math.exp %99 : vector<8x128xf32>
    %cst_76 = arith.constant dense<0.000000e+00> : vector<8xf32>
    %101 = vector.multi_reduction <add>, %100, %cst_76 [1] : vector<8x128xf32> to vector<8xf32>
    %102 = vector.shape_cast %101 : vector<8xf32> to vector<8x1xf32>
    %103 = math.log %102 : vector<8x1xf32>
    %104 = arith.addf %103, %97 : vector<8x1xf32>
    %c0_77 = arith.constant 0 : index
    %c0_78 = arith.constant 0 : index
    %105 = vector.load %arg2[%c0_77, %c0_78] : memref<8x1xi32, #tpu.memory_space<vmem>>, vector<8x1xi32>
    %106 = vector.broadcast %105 : vector<8x1xi32> to vector<8x128xi32>
    %107 = arith.cmpi eq, %91, %106 : vector<8x128xi32>
    %cst_79 = arith.constant 0.000000e+00 : f32
    %108 = vector.broadcast %cst_79 : f32 to vector<8x128xf32>
    %109 = arith.select %107, %89, %108 : vector<8x128xi1>, vector<8x128xf32>
    %cst_80 = arith.constant dense<0.000000e+00> : vector<8xf32>
    %110 = vector.multi_reduction <add>, %109, %cst_80 [1] : vector<8x128xf32> to vector<8xf32>
    %111 = vector.shape_cast %110 : vector<8xf32> to vector<8x1xf32>
    %112 = arith.subf %104, %111 : vector<8x1xf32>
    %c0_81 = arith.constant 0 : index
    %c0_82 = arith.constant 0 : index
    %113 = vector.load %arg5[%c0_81, %c0_82] : memref<8x1xf32, #tpu.memory_space<vmem>>, vector<8x1xf32>
    tpu.vector_store %arg5[%c0_81, %c0_82], %112 {strides = array<i32>} : memref<8x1xf32, #tpu.memory_space<vmem>>, vector<8x1xf32>,
    return
  }
  func.func @transform_0(%arg0: i32, %arg1: memref<16xi32, #tpu.memory_space<smem>>) -> (i32, i32) {
    %c0_i32 = arith.constant 0 : i32
    %c0_i32_0 = arith.constant 0 : i32
    return %arg0, %c0_i32 : i32, i32
  }
  func.func @transform_2(%arg0: i32, %arg1: memref<16xi32, #tpu.memory_space<smem>>) -> (i32, i32) {
    %c0_i32 = arith.constant 0 : i32
    %c0_i32_0 = arith.constant 0 : i32
    return %arg0, %c0_i32 : i32, i32
  }
  func.func @transform_3(%arg0: i32, %arg1: memref<16xi32, #tpu.memory_space<smem>>) -> (i32, i32) {
    %c0_i32 = arith.constant 0 : i32
    %c0_i32_0 = arith.constant 0 : i32
    return %arg0, %c0_i32 : i32, i32
  }
}

</mosaic_0001>

<llo_original>
// kernel: tpu_custom_call.1
$region0: #{tpu_custom_call.1}
  #allocation0 [shape = 'u32[]', space=smem, size = 0x4, offset = 0x4, fixed_abs, tag = 'smem constant byte address 0x4 - core index']
  #allocation1 [shape = 'u32[144,128]{1,0:T(1,128)}', space=vmem, size = 0x12000, scoped, tag = 'internal scratch']
  #allocation2 [shape = 'f32[8,128]{1,0:T(8,128)}', space=vmem, size = 0x1000, scoped, tag = 'scratch operand']
  #allocation3 [shape = 's32[8]{0}', space=sflag, size = 0x20, scoped, tag = 'scratch operand']
  #allocation4 [shape = 's32[1]{0}', space=sflag, size = 0x4, scoped, tag = 'scoped memory for tpu_custom_call.1']
  #allocation5 [shape = 'u8[512]{0}', space=smem, size = 0x200, scoped, tag = 'prefetched SMEM operand 0']
  #allocation8 [shape = 's32[]', space=sflag, size = 0x4, offset = 0, fixed_abs, tag = 'sflag constant byte address 0x0 - dummy sync flag']
  #allocation9 [shape = 's32[]', space=sflag, size = 0x4, offset = 0, fixed_abs, tag = 'sflag constant byte address 0x0 - dummy sync flag']
  #allocation10 [shape = 'u32[]', space=smem, size = 0x4, offset = 0x44, fixed_abs, tag = 'smem constant byte address 0x44 - assertion arg 0']
  #allocation11 [shape = 'u32[]', space=smem, size = 0x4, offset = 0x48, fixed_abs, tag = 'smem constant byte address 0x48 - assertion arg 1']
  #allocation12 [shape = 's32[]', space=sflag, size = 0x4, offset = 0, fixed_abs, tag = 'sflag constant byte address 0x0 - dummy sync flag']
  #allocation13 [shape = 's32[]', space=sflag, size = 0x4, offset = 0, fixed_abs, tag = 'sflag constant byte address 0x0 - dummy sync flag']
  #allocation14 [shape = 's32[]', space=sflag, size = 0x4, offset = 0, fixed_abs, tag = 'sflag constant byte address 0x0 - dummy sync flag']
  #allocation15 [shape = 's32[]', space=sflag, size = 0x4, offset = 0, fixed_abs, tag = 'sflag constant byte address 0x0 - dummy sync flag']
  #allocation16 [shape = 's32[]', space=sflag, size = 0x4, offset = 0, fixed_abs, tag = 'sflag constant byte address 0x0 - dummy sync flag']
  #allocation17 [shape = 's32[]', space=sflag, size = 0x4, offset = 0, fixed_abs, tag = 'sflag constant byte address 0x0 - dummy sync flag']
  #allocation18 [shape = 's32[]', space=sflag, size = 0x4, offset = 0, fixed_abs, tag = 'sflag constant byte address 0x0 - dummy sync flag']
  #allocation19 [shape = 's32[]', space=sflag, size = 0x4, offset = 0, fixed_abs, tag = 'sflag constant byte address 0x0 - dummy sync flag']
  #allocation20 [shape = 's32[]', space=sflag, size = 0x4, offset = 0, fixed_abs, tag = 'sflag constant byte address 0x0 - dummy sync flag']
  #allocation21 [shape = 's32[]', space=sflag, size = 0x4, offset = 0, fixed_abs, tag = 'sflag constant byte address 0x0 - dummy sync flag']
  #allocation22 [shape = 's32[]', space=sflag, size = 0x4, offset = 0, fixed_abs, tag = 'sflag constant byte address 0x0 - dummy sync flag']
  #allocation23 [shape = 's32[]', space=sflag, size = 0x4, offset = 0, fixed_abs, tag = 'sflag constant byte address 0x0 - dummy sync flag']
  #allocation24 [shape = 's32[]', space=sflag, size = 0x4, offset = 0, fixed_abs, tag = 'sflag constant byte address 0x0 - dummy sync flag']
  #allocation25 [shape = 's32[]', space=sflag, size = 0x4, offset = 0, fixed_abs, tag = 'sflag constant byte address 0x0 - dummy sync flag']
  %s0 = inlined_call_operand.vmem [shape: s32[16], index: 0, kind: input, shape index: {}]
  %s1 = inlined_call_operand.vmem [shape: s32[16,1], index: 1, kind: input, shape index: {}]
  %s2 = inlined_call_operand.hbm [shape: f32[32,128], index: 2, kind: input, shape index: {}]
  %s3 = inlined_call_operand.hbm [shape: f32[16,128], index: 3, kind: output, shape index: {0}]
  %s4 = inlined_call_operand.vmem [shape: f32[16,1], index: 4, kind: output, shape index: {1}]
  %5 = xla_tuple %s3, %s4
  %s6 = sld [smem:[#allocation0]]
  $region77: #{tpu_custom_call.1} parent=0
    _
  %s8 = ssub.s32 1, %s6
  %s9 = scalar_select 0, %s8, %s6
  %s10 = sshll.u32 %s0, 4
  %s11 = int_to_ptr.vmem [resolvable:$true] %s10
  %13 = dma.vmem_to_smem %s11, 16, [#allocation5], [#allocation4]
  %14 = dma.done [#allocation4], 16
  %15 = sfence
  $region1: #{tpu_custom_call.1} parent=0
    #allocation6 [shape = 'u8[8192]{0}', space=vmem, size = 0x2000, scoped, tag = 'output window, operand 0']
    #allocation7 [shape = 's32[2]{0}', space=sflag, size = 0x8, scoped, tag = 'scoped memory for tpu_custom_call.1']
    %16 = vsyncpa [#allocation7], 0
    %s17 = scalar_lea.sflag [#allocation7], 1
    %18 = vsyncpa %s17, 0
    loop: start=0, step=1, limit=4
    $region2: #{tpu_custom_call.1} parent=1 // loop_pre_header
      _
    $region3: #{tpu_custom_call.1} parent=1 // loop_header
      %s20 = sphi 0, %s24
      %p21 = scmp.ge.s32.totalorder %s20, 4
      %s30 = sphi 0, %s32
      %s33 = sphi 0, %s30
      %s34 = sphi 0, %s33
      %s50 = sphi 0, %s34
      %s56 = sphi 0, %s58
      %s59 = sphi 0, %s56
      %s60 = sphi 0, %s59
      %s76 = sphi 0, %s60
      %s82 = sphi 0, %s84
      %s85 = sphi 0, %s82
      %s86 = sphi 0, %s85
      %s102 = sphi 0, %s86
    $region4: #{tpu_custom_call.1} parent=1 // loop_header_branch
      %23 = sbr.rel (%p21) target = $region8
    $region5: #{tpu_custom_call.1} parent=1 // loop_body
      %s25 = ssub.s32 %s20, 1
      %s26 = ssub.s32 %s20, 2
      %s27 = sadd.s32 %s20, 1
      %s28 = ssub.s32 %s20, %s27
      %p29 = scmp.eq.s32.totalorder %s28, 0
      %s31 = sadd.s32 %s30, 1
      %s32 = scalar_select %p29, %s30, %s31
      %p35 = pneg %p29
      %p36 = scmp.eq.s32.totalorder %s20, 1
      %p37 = por %p35, %p36
      %p38 = scmp.ne.s32.totalorder %s30, %s33
      %p39 = scmp.eq.s32.totalorder %s20, 0
      %p40 = por %p38, %p39
      %p41 = scmp.ne.s32.totalorder %s30, %s33
      %p42 = scmp.eq.s32.totalorder %s25, 1
      %p43 = por %p41, %p42
      %p44 = scmp.ne.s32.totalorder %s33, %s34
      %p45 = scmp.eq.s32.totalorder %s25, 0
      %p46 = por %p44, %p45
      %p47 = scmp.ne.s32.totalorder %s33, %s34
      %p48 = scmp.eq.s32.totalorder %s26, 1
      %p49 = por %p47, %p48
      %p51 = scmp.ne.s32.totalorder %s34, %s50
      %p52 = scmp.eq.s32.totalorder %s26, 0
      %p53 = por %p51, %p52
      %s54 = ssub.s32 %s20, %s27
      %p55 = scmp.eq.s32.totalorder %s54, 0
      %s57 = sadd.s32 %s56, 1
      %s58 = scalar_select %p55, %s56, %s57
      %p61 = pneg %p55
      %p62 = scmp.eq.s32.totalorder %s20, 1
      %p63 = por %p61, %p62
      %p64 = scmp.ne.s32.totalorder %s56, %s59
      %p65 = scmp.eq.s32.totalorder %s20, 0
      %p66 = por %p64, %p65
      %p67 = scmp.ne.s32.totalorder %s56, %s59
      %p68 = scmp.eq.s32.totalorder %s25, 1
      %p69 = por %p67, %p68
      %p70 = scmp.ne.s32.totalorder %s59, %s60
      %p71 = scmp.eq.s32.totalorder %s25, 0
      %p72 = por %p70, %p71
      %p73 = scmp.ne.s32.totalorder %s59, %s60
      %p74 = scmp.eq.s32.totalorder %s26, 1
      %p75 = por %p73, %p74
      %p77 = scmp.ne.s32.totalorder %s60, %s76
      %p78 = scmp.eq.s32.totalorder %s26, 0
      %p79 = por %p77, %p78
      %s80 = ssub.s32 %s20, %s27
      %p81 = scmp.eq.s32.totalorder %s80, 0
      %s83 = sadd.s32 %s82, 1
      %s84 = scalar_select %p81, %s82, %s83
      %p87 = pneg %p81
      %p88 = scmp.eq.s32.totalorder %s20, 1
      %p89 = por %p87, %p88
      %p90 = scmp.ne.s32.totalorder %s82, %s85
      %p91 = scmp.eq.s32.totalorder %s20, 0
      %p92 = por %p90, %p91
      %p93 = scmp.ne.s32.totalorder %s82, %s85
      %p94 = scmp.eq.s32.totalorder %s25, 1
      %p95 = por %p93, %p94
      %p96 = scmp.ne.s32.totalorder %s85, %s86
      %p97 = scmp.eq.s32.totalorder %s25, 0
      %p98 = por %p96, %p97
      %p99 = scmp.ne.s32.totalorder %s85, %s86
      %p100 = scmp.eq.s32.totalorder %s26, 1
      %p101 = por %p99, %p100
      %p103 = scmp.ne.s32.totalorder %s86, %s102
      %p104 = scmp.eq.s32.totalorder %s26, 0
      %p105 = por %p103, %p104
      %p106 = scmp.le.s32.totalorder 1, %s20
      %p107 = scmp.lt.s32.totalorder %s20, 3
      %p108 = pnand %p106, %p107
      %p109 = pneg %p108
      // Predicated region
      $region9: #{tpu_custom_call.1} parent=5 // pred_check
        _
      $region10: #{tpu_custom_call.1} parent=5 // pred_check_branch
        %111 = sbr.rel (%p108) target = $region12
      $region11: #{tpu_custom_call.1} parent=5 // pred_region
        %s112 = ssub.s32 %s20, 1
      $region12: #{tpu_custom_call.1} parent=5 // pred_fallthru
        _
      %p113 = scmp.lt.s32.totalorder %s20, 2
      // Predicated region
      $region13: #{tpu_custom_call.1} parent=5 // pred_check
        %p114 = pneg %p113
      $region14: #{tpu_custom_call.1} parent=5 // pred_check_branch
        %116 = sbr.rel (%p114) target = $region16
      $region15: #{tpu_custom_call.1} parent=5 // pred_region
        // Predicated region
        $region17: #{tpu_custom_call.1} parent=15 // pred_check
          %p117 = pneg %p40
        $region18: #{tpu_custom_call.1} parent=15 // pred_check_branch
          %119 = sbr.rel (%p117) target = $region20
        $region19: #{tpu_custom_call.1} parent=15 // pred_region
          %p120 = scmp.lt.s32.totalorder %s20, 1
          %s121 = scalar_select %p120, %s20, 1
          %s122 = smul.addr %s121, 8
          %s123 = scalar_lea.vmem %s1, %s122
        $region20: #{tpu_custom_call.1} parent=15 // pred_fallthru
          _
      $region16: #{tpu_custom_call.1} parent=5 // pred_fallthru
        _
      %p124 = scmp.le.s32.totalorder 1, %s20
      %p125 = scmp.lt.s32.totalorder %s20, 3
      %p126 = pnand %p124, %p125
      %p127 = pneg %p126
      // Predicated region
      $region21: #{tpu_custom_call.1} parent=5 // pred_check
        _
      $region22: #{tpu_custom_call.1} parent=5 // pred_check_branch
        %129 = sbr.rel (%p126) target = $region24
      $region23: #{tpu_custom_call.1} parent=5 // pred_region
        %s130 = ssub.s32 %s20, 1
        %p131 = scmp.lt.s32.totalorder %s25, 1
        %s132 = scalar_select %p131, %s25, 1
        %s133 = smul.addr %s132, 8
        %s134 = scalar_lea.vmem %s1, %s133
        %p135 = pneg %p46
        %p136 = pneg %p43
        %p137 = pneg %p72
        %p138 = pneg %p69
        %s139 = sand.u32 %s59, 1
        %s140 = scalar_lea.sflag [#allocation7], %s139
        %s141 = sand.u32 %s59, 1
        %s142 = smul.addr %s141, 8
        %s143 = scalar_lea.vmem [#allocation6], %s142
        %p144 = pneg %p98
        %p145 = pneg %p95
        %p146 = scmp.lt.s32.totalorder %s25, 1
        %s147 = scalar_select %p146, %s25, 1
        %s148 = smul.addr %s147, 8
        %s149 = scalar_lea.vmem %s4, %s148
        %p150 = scmp.lt.s32.totalorder %s25, 1
        %s151 = scalar_select %p150, %s25, 1
        %s152 = smul.addr %s151, 8
        %s153 = scalar_lea.vmem %s1, %s152
        %p154 = scmp.lt.s32.totalorder %s25, 1
        %s155 = scalar_select %p154, %s25, 1
        %s156 = smul.addr %s155, 8
        %s157 = scalar_lea.vmem %s4, %s156
        %s158 = smul.u32 %s25, 8
        %s159 = sld [smem:[#allocation5 + %s158]]
        %s160 = smul.addr %s159, 16
        %s161 = scalar_lea.hbm %s2, %s160
        // Predicated region
        $region25: #{tpu_custom_call.1} parent=23 // pred_check
          _
        $region26: #{tpu_custom_call.1} parent=23 // pred_check_branch
          %163 = sbr.rel target = $region28
        $region27: #{tpu_custom_call.1} parent=23 // pred_region
          %164 = sst [smem:[#allocation10]] [#allocation9]
          %165 = sst [smem:[#allocation11]] [#allocation8]
        $region28: #{tpu_custom_call.1} parent=23 // pred_fallthru
          _
        %167 = shalt.err (0)
        %s169 = sshll.u32 [#allocation2], 4
        %s170 = int_to_ptr.vmem [resolvable:$true] %s169
        %172 = dma.hbm_to_vmem [thread:$0]  %s161, 16, %s170, [#allocation3]
        %s173 = sadd.s32 %s158, 1
        %s174 = sld [smem:[#allocation5 + %s173]]
        %s175 = smul.addr %s174, 16
        %s176 = scalar_lea.hbm %s2, %s175
        %s177 = scalar_lea.vmem [#allocation2], 1
        %s178 = scalar_lea.sflag [#allocation3], 1
        // Predicated region
        $region29: #{tpu_custom_call.1} parent=23 // pred_check
          _
        $region30: #{tpu_custom_call.1} parent=23 // pred_check_branch
          %180 = sbr.rel target = $region32
        $region31: #{tpu_custom_call.1} parent=23 // pred_region
          %181 = sst [smem:[#allocation10]] [#allocation13]
          %182 = sst [smem:[#allocation11]] [#allocation12]
        $region32: #{tpu_custom_call.1} parent=23 // pred_fallthru
          _
        %184 = shalt.err (0)
        %s186 = sshll.u32 %s177, 4
        %s187 = int_to_ptr.vmem [resolvable:$true] %s186
        %189 = dma.hbm_to_vmem [thread:$0]  %s176, 16, %s187, %s178
        %s190 = sadd.s32 %s158, 2
        %s191 = sld [smem:[#allocation5 + %s190]]
        %s192 = smul.addr %s191, 16
        %s193 = scalar_lea.hbm %s2, %s192
        %s194 = scalar_lea.vmem [#allocation2], 2
        %s195 = scalar_lea.sflag [#allocation3], 2
        // Predicated region
        $region33: #{tpu_custom_call.1} parent=23 // pred_check
          _
        $region34: #{tpu_custom_call.1} parent=23 // pred_check_branch
          %197 = sbr.rel target = $region36
        $region35: #{tpu_custom_call.1} parent=23 // pred_region
          %198 = sst [smem:[#allocation10]] [#allocation15]
          %199 = sst [smem:[#allocation11]] [#allocation14]
        $region36: #{tpu_custom_call.1} parent=23 // pred_fallthru
          _
        %201 = shalt.err (0)
        %s203 = sshll.u32 %s194, 4
        %s204 = int_to_ptr.vmem [resolvable:$true] %s203
        %206 = dma.hbm_to_vmem [thread:$0]  %s193, 16, %s204, %s195
        %s207 = sadd.s32 %s158, 3
        %s208 = sld [smem:[#allocation5 + %s207]]
        %s209 = smul.addr %s208, 16
        %s210 = scalar_lea.hbm %s2, %s209
        %s211 = scalar_lea.vmem [#allocation2], 3
        %s212 = scalar_lea.sflag [#allocation3], 3
        // Predicated region
        $region37: #{tpu_custom_call.1} parent=23 // pred_check
          _
        $region38: #{tpu_custom_call.1} parent=23 // pred_check_branch
          %214 = sbr.rel target = $region40
        $region39: #{tpu_custom_call.1} parent=23 // pred_region
          %215 = sst [smem:[#allocation10]] [#allocation17]
          %216 = sst [smem:[#allocation11]] [#allocation16]
        $region40: #{tpu_custom_call.1} parent=23 // pred_fallthru
          _
        %218 = shalt.err (0)
        %s220 = sshll.u32 %s211, 4
        %s221 = int_to_ptr.vmem [resolvable:$true] %s220
        %223 = dma.hbm_to_vmem [thread:$0]  %s210, 16, %s221, %s212
        %s224 = sadd.s32 %s158, 4
        %s225 = sld [smem:[#allocation5 + %s224]]
        %s226 = smul.addr %s225, 16
        %s227 = scalar_lea.hbm %s2, %s226
        %s228 = scalar_lea.vmem [#allocation2], 4
        %s229 = scalar_lea.sflag [#allocation3], 4
        // Predicated region
        $region41: #{tpu_custom_call.1} parent=23 // pred_check
          _
        $region42: #{tpu_custom_call.1} parent=23 // pred_check_branch
          %231 = sbr.rel target = $region44
        $region43: #{tpu_custom_call.1} parent=23 // pred_region
          %232 = sst [smem:[#allocation10]] [#allocation19]
          %233 = sst [smem:[#allocation11]] [#allocation18]
        $region44: #{tpu_custom_call.1} parent=23 // pred_fallthru
          _
        %235 = shalt.err (0)
        %s237 = sshll.u32 %s228, 4
        %s238 = int_to_ptr.vmem [resolvable:$true] %s237
        %240 = dma.hbm_to_vmem [thread:$0]  %s227, 16, %s238, %s229
        %s241 = sadd.s32 %s158, 5
        %s242 = sld [smem:[#allocation5 + %s241]]
        %s243 = smul.addr %s242, 16
        %s244 = scalar_lea.hbm %s2, %s243
        %s245 = scalar_lea.vmem [#allocation2], 5
        %s246 = scalar_lea.sflag [#allocation3], 5
        // Predicated region
        $region45: #{tpu_custom_call.1} parent=23 // pred_check
          _
        $region46: #{tpu_custom_call.1} parent=23 // pred_check_branch
          %248 = sbr.rel target = $region48
        $region47: #{tpu_custom_call.1} parent=23 // pred_region
          %249 = sst [smem:[#allocation10]] [#allocation21]
          %250 = sst [smem:[#allocation11]] [#allocation20]
        $region48: #{tpu_custom_call.1} parent=23 // pred_fallthru
          _
        %252 = shalt.err (0)
        %s254 = sshll.u32 %s245, 4
        %s255 = int_to_ptr.vmem [resolvable:$true] %s254
        %257 = dma.hbm_to_vmem [thread:$0]  %s244, 16, %s255, %s246
        %s258 = sadd.s32 %s158, 6
        %s259 = sld [smem:[#allocation5 + %s258]]
        %s260 = smul.addr %s259, 16
        %s261 = scalar_lea.hbm %s2, %s260
        %s262 = scalar_lea.vmem [#allocation2], 6
        %s263 = scalar_lea.sflag [#allocation3], 6
        // Predicated region
        $region49: #{tpu_custom_call.1} parent=23 // pred_check
          _
        $region50: #{tpu_custom_call.1} parent=23 // pred_check_branch
          %265 = sbr.rel target = $region52
        $region51: #{tpu_custom_call.1} parent=23 // pred_region
          %266 = sst [smem:[#allocation10]] [#allocation23]
          %267 = sst [smem:[#allocation11]] [#allocation22]
        $region52: #{tpu_custom_call.1} parent=23 // pred_fallthru
          _
        %269 = shalt.err (0)
        %s271 = sshll.u32 %s262, 4
        %s272 = int_to_ptr.vmem [resolvable:$true] %s271
        %274 = dma.hbm_to_vmem [thread:$0]  %s261, 16, %s272, %s263
        %s275 = sadd.s32 %s158, 7
        %s276 = sld [smem:[#allocation5 + %s275]]
        %s277 = smul.addr %s276, 16
        %s278 = scalar_lea.hbm %s2, %s277
        %s279 = scalar_lea.vmem [#allocation2], 7
        %s280 = scalar_lea.sflag [#allocation3], 7
        // Predicated region
        $region53: #{tpu_custom_call.1} parent=23 // pred_check
          _
        $region54: #{tpu_custom_call.1} parent=23 // pred_check_branch
          %282 = sbr.rel target = $region56
        $region55: #{tpu_custom_call.1} parent=23 // pred_region
          %283 = sst [smem:[#allocation10]] [#allocation25]
          %284 = sst [smem:[#allocation11]] [#allocation24]
        $region56: #{tpu_custom_call.1} parent=23 // pred_fallthru
          _
        %286 = shalt.err (0)
        %s288 = sshll.u32 %s279, 4
        %s289 = int_to_ptr.vmem [resolvable:$true] %s288
        %291 = dma.hbm_to_vmem [thread:$0]  %s278, 16, %s289, %s280
        %s292 = smul.u32 1, 1
        %s293 = sshll.u32 %s292, 4
        %294 = dma.done [#allocation3], %s293
        %s295 = sshll.u32 %s292, 4
        %296 = dma.done %s178, %s295
        %s297 = sshll.u32 %s292, 4
        %298 = dma.done %s195, %s297
        %s299 = sshll.u32 %s292, 4
        %300 = dma.done %s212, %s299
        %s301 = sshll.u32 %s292, 4
        %302 = dma.done %s229, %s301
        %s303 = sshll.u32 %s292, 4
        %304 = dma.done %s246, %s303
        %s305 = sshll.u32 %s292, 4
        %306 = dma.done %s263, %s305
        %s307 = sshll.u32 %s292, 4
        %308 = dma.done %s280, %s307
        %v309 = vld [vmem:[#allocation2] sm:$0xff]
        %310 = vst [vmem:[%s143] sm:$0xff] %v309
        %v311 = vlaneseq
        %v312 = vand.u32 %v311, 127
        %vm313 = vcmp.lt.s32.totalorder %v312, 32
        %v314 = vsel %vm313, %v309, -1e+30
        %315 = vmax.xlane.f32.xlu0 %v314
        %v316 = vpop.xlane.xlu0 %315
        %v317 = vsub.f32 %v314, %v316
        %v318 = vmul.f32 %v317, 1.442695
        %v319 = vpow.pop %v318
        %320 = vadd.xlane.f32.xlu0 %v319
        %v321 = vpop.xlane.xlu0 %320
        %v322 = vlog2.pop %v321
        %v323 = vmul.f32 %v322, 0.6931472
        %v324 = vadd.f32 %v323, %v316
        %v325 = vld [vmem:[%s153] sm:$0xff]
        %326 = vset.pattern.permute.xlu0 0
        %327 = vperm.xlu0 %326, %v325
        %v328 = vpop.permute.xlu0 %327
        %vm329 = vcmp.eq.s32.totalorder %v312, %v328
        %v330 = vsel %vm329, %v309, 0.0
        %331 = vadd.xlane.f32.xlu0 %v330
        %v332 = vpop.xlane.xlu0 %331
        %v333 = vsub.f32 %v324, %v332
        %vm334 = vcmask 7168
        %335 = vst.msk [vmem:[%s157] sm:$0xff] %vm334, %v333
        %s336 = sand.u32 %s59, 1
        %s337 = scalar_lea.sflag [#allocation7], %s336
        %s338 = sand.u32 %s59, 1
        %s339 = smul.addr %s338, 8
        %s340 = scalar_lea.vmem [#allocation6], %s339
        %p341 = scmp.lt.s32.totalorder %s25, 1
        %s342 = scalar_select %p341, %s25, 1
        %s343 = smul.addr %s342, 8
        %s344 = scalar_lea.vmem %s4, %s343
        // Predicated region
        $region57: #{tpu_custom_call.1} parent=23 // pred_check
          %p345 = pneg %p69
        $region58: #{tpu_custom_call.1} parent=23 // pred_check_branch
          %347 = sbr.rel (%p345) target = $region60
        $region59: #{tpu_custom_call.1} parent=23 // pred_region
          %s349 = ssub.s32 128, 128
          %350 = vsyncadd %s337, %s349
          %s351 = smul.addr %s25, 128
          %s352 = scalar_lea.hbm %s3, %s351
          %s354 = sshll.u32 %s340, 4
          %s355 = int_to_ptr.vmem [resolvable:$true] %s354
          %357 = dma.vmem_to_hbm [thread:$0]  %s355, 128, %s352, %s337
        $region60: #{tpu_custom_call.1} parent=23 // pred_fallthru
          _
        // Predicated region
        $region61: #{tpu_custom_call.1} parent=23 // pred_check
          %p358 = pneg %p95
        $region62: #{tpu_custom_call.1} parent=23 // pred_check_branch
          %360 = sbr.rel (%p358) target = $region64
        $region63: #{tpu_custom_call.1} parent=23 // pred_region
          _
        $region64: #{tpu_custom_call.1} parent=23 // pred_fallthru
          _
      $region24: #{tpu_custom_call.1} parent=5 // pred_fallthru
        _
      %p361 = scmp.le.s32.totalorder 2, %s20
      // Predicated region
      $region65: #{tpu_custom_call.1} parent=5 // pred_check
        %p362 = pneg %p361
      $region66: #{tpu_custom_call.1} parent=5 // pred_check_branch
        %364 = sbr.rel (%p362) target = $region68
      $region67: #{tpu_custom_call.1} parent=5 // pred_region
        %s365 = ssub.s32 %s20, 2
        // Predicated region
        $region69: #{tpu_custom_call.1} parent=67 // pred_check
          %p366 = pneg %p75
        $region70: #{tpu_custom_call.1} parent=67 // pred_check_branch
          %368 = sbr.rel (%p366) target = $region72
        $region71: #{tpu_custom_call.1} parent=67 // pred_region
          %s369 = sand.u32 %s60, 1
          %s370 = scalar_lea.sflag [#allocation7], %s369
          %s371 = sand.u32 %s60, 1
          %s372 = smul.addr %s371, 8
          %s373 = scalar_lea.vmem [#allocation6], %s372
          %374 = dma.done %s370, 128
        $region72: #{tpu_custom_call.1} parent=67 // pred_fallthru
          _
        // Predicated region
        $region73: #{tpu_custom_call.1} parent=67 // pred_check
          %p375 = pneg %p101
        $region74: #{tpu_custom_call.1} parent=67 // pred_check_branch
          %377 = sbr.rel (%p375) target = $region76
        $region75: #{tpu_custom_call.1} parent=67 // pred_region
          %p378 = scmp.lt.s32.totalorder %s26, 1
          %s379 = scalar_select %p378, %s26, 1
          %s380 = smul.addr %s379, 8
          %s381 = scalar_lea.vmem %s4, %s380
        $region76: #{tpu_custom_call.1} parent=67 // pred_fallthru
          _
      $region68: #{tpu_custom_call.1} parent=5 // pred_fallthru
        _
    $region6: #{tpu_custom_call.1} parent=1 // loop_footer
      %s24 = sadd.s32 1, %s20
    $region7: #{tpu_custom_call.1} parent=1 // loop_footer_branch
      %19 = sbr.rel target = $region3
    $region8: #{tpu_custom_call.1} parent=1 // loop_exit
      _
    %382 = vsyncpa [#allocation7], 1
    %s383 = scalar_lea.sflag [#allocation7], 1
    %384 = vsyncpa %s383, 1
  %385 = vsyncmov [#allocation3]
  %s386 = vpop.sfrf %385
  %p387 = scmp.eq.s32.totalorder %s386, 0
  %p388 = pneg %p387
  %390 = shalt.err (%p388)
  %s391 = scalar_lea.sflag [#allocation3], 1
  %392 = vsyncmov %s391
  %s393 = vpop.sfrf %392
  %p394 = scmp.eq.s32.totalorder %s393, 0
  %p395 = pneg %p394
  %397 = shalt.err (%p395)
  %s398 = scalar_lea.sflag [#allocation3], 2
  %399 = vsyncmov %s398
  %s400 = vpop.sfrf %399
  %p401 = scmp.eq.s32.totalorder %s400, 0
  %p402 = pneg %p401
  %404 = shalt.err (%p402)
  %s405 = scalar_lea.sflag [#allocation3], 3
  %406 = vsyncmov %s405
  %s407 = vpop.sfrf %406
  %p408 = scmp.eq.s32.totalorder %s407, 0
  %p409 = pneg %p408
  %411 = shalt.err (%p409)
  %s412 = scalar_lea.sflag [#allocation3], 4
  %413 = vsyncmov %s412
  %s414 = vpop.sfrf %413
  %p415 = scmp.eq.s32.totalorder %s414, 0
  %p416 = pneg %p415
  %418 = shalt.err (%p416)
  %s419 = scalar_lea.sflag [#allocation3], 5
  %420 = vsyncmov %s419
  %s421 = vpop.sfrf %420
  %p422 = scmp.eq.s32.totalorder %s421, 0
  %p423 = pneg %p422
  %425 = shalt.err (%p423)
  %s426 = scalar_lea.sflag [#allocation3], 6
  %427 = vsyncmov %s426
  %s428 = vpop.sfrf %427
  %p429 = scmp.eq.s32.totalorder %s428, 0
  %p430 = pneg %p429
  %432 = shalt.err (%p430)
  %s433 = scalar_lea.sflag [#allocation3], 7
  %434 = vsyncmov %s433
  %s435 = vpop.sfrf %434
  %p436 = scmp.eq.s32.totalorder %s435, 0
  %p437 = pneg %p436
  %439 = shalt.err (%p437)

</llo_original>
